<compile_context>
chip_gen: v5e
topology: v5e:2x2
jax: 0.10.0
libtpu: 0.0.40
codegen_flags: <defaults>
</compile_context>

<pallas_src>
import jax
import jax.numpy as jnp
from jax.experimental import pallas as pl
from jax.experimental.pallas import tpu as pltpu


def _bayes_forward_kernel(scal_ref, xt_ref, w_ref, c2_ref, m_ref, out_ref):
    """One lane-dense N tile of the predictive distribution.

    scal_ref : SMEM (2,)        [m0 (intercept mean), Sig[dim,dim] + sigma^2]
    xt_ref   : VMEM (dim, TN)   feature-major X tile (N on the lane axis)
    w_ref    : VMEM (dim, dim)  Sig[:dim, :dim]                    (resident)
    c2_ref   : VMEM (dim, 1)    2 * Sig[:dim, dim]                 (resident)
    m_ref    : VMEM (dim, 1)    mu[:dim]                           (resident)
    out_ref  : VMEM (2, TN)     row0 = predictive mean, row1 = predictive var
    """
    xt = xt_ref[...]                                   # (dim, TN)
    w = w_ref[...]                                     # (dim, dim)

    # Natural-form MXU matmul: (dim,dim) x (dim,TN) -> (dim,TN), N on lanes.
    wx = jnp.dot(w, xt, preferred_element_type=jnp.float32)

    # mean_n = sum_d mu_d * x_{d,n} + m0     (VPU mul + XLU sublane reduction)
    mean = jnp.sum(m_ref[...] * xt, axis=0, keepdims=True) + scal_ref[0]

    # quad_n = x_n^T W x_n + 2 x_n . c       (cross term folded into the sum)
    prod = (wx + c2_ref[...]) * xt                     # (dim, TN)
    var = jnp.sum(prod, axis=0, keepdims=True) + scal_ref[1]   # + b + sigma^2

    # Single fused store of both rows (lane-dense along N).
    out_ref[...] = jnp.concatenate([mean, var], axis=0)


def bayes_forward(x, mu, sig, sigma2, *, block_n=None):
    """Predictive mean/variance of the BayesModel.

    x      : (N, dim) float32 raw features (intercept handled in-kernel)
    mu     : (D, 1)   float32, D = dim + 1 (last entry = intercept mean)
    sig    : (D, D)   float32 posterior covariance (symmetric)
    sigma2 : noise variance (= 1 / a)
    returns (mean (N, 1), var (N, 1))
    """
    n, dim = x.shape
    d = dim + 1
    assert mu.shape == (d, 1) and sig.shape == (d, d)

    x = x.astype(jnp.float32)
    mu = mu.astype(jnp.float32)
    sig = sig.astype(jnp.float32)

    # One-time feature-major transpose -> lane-dense kernel layout.
    xt = x.T                                            # (dim, N)

    # Tiny (D-sized) parameter prep — negligible HBM traffic.
    w = sig[:dim, :dim]                                 # (dim, dim)
    c2 = (2.0 * sig[:dim, dim]).reshape(dim, 1)         # (dim, 1)
    m = mu[:dim, :]                                     # (dim, 1)
    m0 = mu[dim, 0]
    b = sig[dim, dim]
    scal = jnp.stack([m0, b + jnp.float32(sigma2)]).astype(jnp.float32)  # (2,)

    # Tile choice: big lane-dense tiles; a (dim, TN) f32 tile is dim*TN*4 B,
    # so even TN=32768 double-buffered is well inside every generation's
    # default scoped VMEM.  Keep >= 2 grid steps when N exceeds one block
    # (v7x megacore); single whole-array step otherwise.
    if block_n is None:
        block_n = 32768
    if n <= block_n:
        tn = n
    else:
        bn = max(128, (block_n // 128) * 128)
        half = ((pl.cdiv(n, 2) + 127) // 128) * 128
        tn = min(bn, max(128, half))
    grid = (pl.cdiv(n, tn),)

    cost = pl.CostEstimate(
        flops=2 * n * dim * dim + 6 * n * dim + 2 * n,
        transcendentals=0,
        bytes_accessed=n * dim * 4 + 2 * n * 4 + (dim * dim + 3 * dim + 2) * 4,
    )

    out = pl.pallas_call(
        _bayes_forward_kernel,
        out_shape=jax.ShapeDtypeStruct((2, n), jnp.float32),
        grid_spec=pltpu.PrefetchScalarGridSpec(
            num_scalar_prefetch=0,
            grid=grid,
            in_specs=[
                # scalars [m0, b + sigma^2] in SMEM
                pl.BlockSpec(memory_space=pltpu.MemorySpace.SMEM),
                # X^T streamed in lane-dense (dim, TN) tiles
                pl.BlockSpec((dim, tn), lambda i: (0, i)),
                # Sig_ww, 2c, m stay VMEM-resident across all tiles
                pl.BlockSpec((dim, dim), lambda i: (0, 0)),
                pl.BlockSpec((dim, 1), lambda i: (0, 0)),
                pl.BlockSpec((dim, 1), lambda i: (0, 0)),
            ],
            # Lane-dense output: (2, N) with N on the lane axis.
            out_specs=pl.BlockSpec((2, tn), lambda i: (0, i)),
        ),
        compiler_params=pltpu.CompilerParams(
            dimension_semantics=("parallel",),
        ),
        cost_estimate=cost,
    )(scal, xt, w, c2, m)

    mean = out[0, :].reshape(n, 1)
    var = out[1, :].reshape(n, 1)
    return mean, var


def _reference(x, mu, sig, sigma2):
    n = x.shape[0]
    x_aug = jnp.concatenate([x, jnp.ones((n, 1), dtype=x.dtype)], axis=1)
    hp = jax.lax.Precision.HIGHEST
    mean = jnp.dot(x_aug, mu, precision=hp)
    var = jnp.sum(jnp.dot(x_aug, sig, precision=hp) * x_aug,
                  axis=-1, keepdims=True) + sigma2
    return mean, var


if __name__ == "__main__":
    # Shapes consistent with the module: dim=7 features -> D=8 with intercept.
    dim = 7
    d = dim + 1

    key = jax.random.PRNGKey(0)
    kx, kr = jax.random.split(key)

    # Deterministic parameters: nonzero mu and a symmetric PSD covariance with
    # nonzero feature/intercept cross terms (exercises the 2*x.c path).
    mu = (0.1 * jnp.arange(d, dtype=jnp.float32)).reshape(d, 1)
    r = jax.random.normal(kr, (d, d), dtype=jnp.float32)
    sig = r @ r.T / d + 0.5 * jnp.eye(d, dtype=jnp.float32)
    sigma = 0.5
    sigma2 = sigma * sigma          # = 1 / a

    # Case 1: multiple full tiles (exercises the pipelined parallel grid).
    n1 = 4096
    x1 = jax.random.normal(kx, (n1, dim), dtype=jnp.float32)
    mean1, var1 = bayes_forward(x1, mu, sig, sigma2, block_n=1024)
    jax.block_until_ready((mean1, var1))
    m_ref1, v_ref1 = _reference(x1, mu, sig, sigma2)
    assert jnp.allclose(mean1, m_ref1, atol=1e-3, rtol=1e-3), "mean mismatch (n=4096)"
    assert jnp.allclose(var1, v_ref1, atol=1e-3, rtol=1e-3), "var mismatch (n=4096)"

    # Case 2: ragged N (partial last tile) — relies on Pallas edge-block
    # padding/masking; all math is per-row so it is exact.
    n2 = 2500
    x2 = x1[:n2]
    mean2, var2 = bayes_forward(x2, mu, sig, sigma2, block_n=1024)
    jax.block_until_ready((mean2, var2))
    m_ref2, v_ref2 = _reference(x2, mu, sig, sigma2)
    assert jnp.allclose(mean2, m_ref2, atol=1e-3, rtol=1e-3), "mean mismatch (ragged n)"
    assert jnp.allclose(var2, v_ref2, atol=1e-3, rtol=1e-3), "var mismatch (ragged n)"

    print("KERNEL_OK")
</pallas_src>

<mosaic_0001>
module attributes {stable_mosaic.version = 11 : i64} {
  func.func @_bayes_forward_kernel(%arg0: i32, %arg1: memref<2xf32, #tpu.memory_space<smem>>, %arg2: memref<7x1024xf32, #tpu.memory_space<vmem>>, %arg3: memref<7x7xf32, #tpu.memory_space<vmem>>, %arg4: memref<7x1xf32, #tpu.memory_space<vmem>>, %arg5: memref<7x1xf32, #tpu.memory_space<vmem>>, %arg6: memref<2x1024xf32, #tpu.memory_space<vmem>>) attributes {dimension_semantics = [#tpu.dimension_semantics<parallel>], iteration_bounds = array<i64: 4>, scalar_prefetch = 0 : i64, scratch_operands = 0 : i64, tpu.core_type = #tpu.core_type<tc>, window_params = [{transform_indices = @transform_0, window_bounds = array<i64: 2>}, {transform_indices = @transform_1, window_bounds = array<i64: 7, 1024>}, {pipeline_mode = #tpu.pipeline_mode<synchronous>, transform_indices = @transform_2, window_bounds = array<i64: 7, 7>}, {pipeline_mode = #tpu.pipeline_mode<synchronous>, transform_indices = @transform_3, window_bounds = array<i64: 7, 1>}, {pipeline_mode = #tpu.pipeline_mode<synchronous>, transform_indices = @transform_4, window_bounds = array<i64: 7, 1>}, {transform_indices = @transform_5, window_bounds = array<i64: 2, 1024>}]} {
    %c0 = arith.constant 0 : index
    %c0_0 = arith.constant 0 : index
    %0 = vector.load %arg2[%c0, %c0_0] : memref<7x1024xf32, #tpu.memory_space<vmem>>, vector<7x1024xf32>
    %c0_1 = arith.constant 0 : index
    %c0_2 = arith.constant 0 : index
    %1 = vector.load %arg3[%c0_1, %c0_2] : memref<7x7xf32, #tpu.memory_space<vmem>>, vector<7x7xf32>
    %cst = arith.constant dense<0.000000e+00> : vector<7x1024xf32>
    %2 = tpu.matmul %1, %0, %cst {dimension_numbers = #tpu.dot_dimension_numbers<[1], [0], [0], [1], [0, 0, 1, 1], [], []>} : vector<7x7xf32>, vector<7x1024xf32>, vector<7x1024xf32> -> vector<7x1024xf32>
    %c0_3 = arith.constant 0 : index
    %c0_4 = arith.constant 0 : index
    %3 = vector.load %arg5[%c0_3, %c0_4] : memref<7x1xf32, #tpu.memory_space<vmem>>, vector<7x1xf32>
    %4 = vector.broadcast %3 : vector<7x1xf32> to vector<7x1024xf32>
    %5 = arith.mulf %4, %0 : vector<7x1024xf32>
    %cst_5 = arith.constant dense<0.000000e+00> : vector<1024xf32>
    %6 = vector.multi_reduction <add>, %5, %cst_5 [0] : vector<7x1024xf32> to vector<1024xf32>
    %7 = vector.shape_cast %6 : vector<1024xf32> to vector<1x1024xf32>
    %c0_6 = arith.constant 0 : index
    %8 = memref.load %arg1[%c0_6] : memref<2xf32, #tpu.memory_space<smem>>
    %9 = vector.broadcast %8 : f32 to vector<1x1024xf32>
    %10 = arith.addf %7, %9 : vector<1x1024xf32>
    %c0_7 = arith.constant 0 : index
    %c0_8 = arith.constant 0 : index
    %11 = vector.load %arg4[%c0_7, %c0_8] : memref<7x1xf32, #tpu.memory_space<vmem>>, vector<7x1xf32>
    %12 = vector.broadcast %11 : vector<7x1xf32> to vector<7x1024xf32>
    %13 = arith.addf %2, %12 : vector<7x1024xf32>
    %14 = arith.mulf %13, %0 : vector<7x1024xf32>
    %cst_9 = arith.constant dense<0.000000e+00> : vector<1024xf32>
    %15 = vector.multi_reduction <add>, %14, %cst_9 [0] : vector<7x1024xf32> to vector<1024xf32>
    %16 = vector.shape_cast %15 : vector<1024xf32> to vector<1x1024xf32>
    %c1 = arith.constant 1 : index
    %17 = memref.load %arg1[%c1] : memref<2xf32, #tpu.memory_space<smem>>
    %18 = vector.broadcast %17 : f32 to vector<1x1024xf32>
    %19 = arith.addf %16, %18 : vector<1x1024xf32>
    %20 = tpu.concatenate %10, %19 in 0 : vector<1x1024xf32>, vector<1x1024xf32> -> vector<2x1024xf32>
    %c0_10 = arith.constant 0 : index
    %c0_11 = arith.constant 0 : index
    %21 = vector.load %arg6[%c0_10, %c0_11] : memref<2x1024xf32, #tpu.memory_space<vmem>>, vector<2x1024xf32>
    tpu.vector_store %arg6[%c0_10, %c0_11], %20 {strides = array<i32>} : memref<2x1024xf32, #tpu.memory_space<vmem>>, vector<2x1024xf32>,
    return
  }
  func.func @transform_0(%arg0: i32) -> i32 {
    %c0_i32 = arith.constant 0 : i32
    %c0_i32_0 = arith.constant 0 : i32
    return %c0_i32 : i32
  }
  func.func @transform_1(%arg0: i32) -> (i32, i32) {
    %c0_i32 = arith.constant 0 : i32
    %c0_i32_0 = arith.constant 0 : i32
    return %c0_i32, %arg0 : i32, i32
  }
  func.func @transform_2(%arg0: i32) -> (i32, i32) {
    %c0_i32 = arith.constant 0 : i32
    %c0_i32_0 = arith.constant 0 : i32
    %c0_i32_1 = arith.constant 0 : i32
    return %c0_i32, %c0_i32_0 : i32, i32
  }
  func.func @transform_3(%arg0: i32) -> (i32, i32) {
    %c0_i32 = arith.constant 0 : i32
    %c0_i32_0 = arith.constant 0 : i32
    %c0_i32_1 = arith.constant 0 : i32
    return %c0_i32, %c0_i32_0 : i32, i32
  }
  func.func @transform_4(%arg0: i32) -> (i32, i32) {
    %c0_i32 = arith.constant 0 : i32
    %c0_i32_0 = arith.constant 0 : i32
    %c0_i32_1 = arith.constant 0 : i32
    return %c0_i32, %c0_i32_0 : i32, i32
  }
  func.func @transform_5(%arg0: i32) -> (i32, i32) {
    %c0_i32 = arith.constant 0 : i32
    %c0_i32_0 = arith.constant 0 : i32
    return %c0_i32, %arg0 : i32, i32
  }
}

</mosaic_0001>

<llo_original>
// kernel: tpu_custom_call.1
$region0: #{tpu_custom_call.1}
  #allocation0 [shape = 'u32[]', space=smem, size = 0x4, offset = 0x4, fixed_abs, tag = 'smem constant byte address 0x4 - core index']
  #allocation1 [shape = 'u32[72,128]{1,0:T(1,128)}', space=vmem, size = 0x9000, scoped, tag = 'internal scratch']
  %s0 = inlined_call_operand.vmem [shape: f32[2], index: 0, kind: input, shape index: {}]
  %s1 = inlined_call_operand.hbm [shape: f32[7,4096], index: 1, kind: input, shape index: {}]
  %s2 = inlined_call_operand.vmem [shape: f32[7,7], index: 2, kind: input, shape index: {}]
  %s3 = inlined_call_operand.vmem [shape: f32[7,1], index: 3, kind: input, shape index: {}]
  %s4 = inlined_call_operand.vmem [shape: f32[7,1], index: 4, kind: input, shape index: {}]
  %s5 = inlined_call_operand.hbm [shape: f32[2,4096], index: 5, kind: output, shape index: {}]
  %s6 = sld [smem:[#allocation0]]
  $region61: #{tpu_custom_call.1} parent=0
    _
  %s8 = ssub.s32 1, %s6
  %s9 = scalar_select 0, %s8, %s6
  $region1: #{tpu_custom_call.1} parent=0
    #allocation2 [shape = 'u8[512]{0}', space=smem, size = 0x200, scoped, tag = 'input window, operand 0, single buffered']
    #allocation3 [shape = 's32[2]{0}', space=sflag, size = 0x8, scoped, tag = 'scoped memory for tpu_custom_call.1']
    #allocation4 [shape = 's32[2]{0}', space=sflag, size = 0x8, scoped, tag = 'scoped memory for tpu_custom_call.1']
    #allocation5 [shape = 's32[2]{0}', space=sflag, size = 0x8, scoped, tag = 'scoped memory for tpu_custom_call.1']
    #allocation6 [shape = 'u8[65536]{0}', space=vmem, size = 0x10000, scoped, tag = 'input window, operand 1']
    #allocation7 [shape = 'u8[16384]{0}', space=vmem, size = 0x4000, scoped, tag = 'output window, operand 0']
    %10 = vsyncpa [#allocation5], 0
    %11 = vsyncpa [#allocation3], 0
    %s12 = scalar_lea.sflag [#allocation3], 1
    %13 = vsyncpa %s12, 0
    %14 = vsyncpa [#allocation4], 0
    %s15 = scalar_lea.sflag [#allocation4], 1
    %16 = vsyncpa %s15, 0
    loop: start=0, step=1, limit=6
    $region2: #{tpu_custom_call.1} parent=1 // loop_pre_header
      _
    $region3: #{tpu_custom_call.1} parent=1 // loop_header
      %s18 = sphi 0, %s22
      %p19 = scmp.ge.s32.totalorder %s18, 6
      %s26 = sphi 0, %s26
      %s28 = sphi 0, %s26
      %s29 = sphi 0, %s28
      %s43 = sphi 0, %s29
      %s49 = sphi 0, %s51
      %s52 = sphi 0, %s49
      %s53 = sphi 0, %s52
      %s69 = sphi 0, %s53
      %s73 = sphi 0, %s73
      %s75 = sphi 0, %s73
      %s76 = sphi 0, %s75
      %s90 = sphi 0, %s76
      %s94 = sphi 0, %s94
      %s96 = sphi 0, %s94
      %s97 = sphi 0, %s96
      %s111 = sphi 0, %s97
      %s115 = sphi 0, %s115
      %s117 = sphi 0, %s115
      %s118 = sphi 0, %s117
      %s132 = sphi 0, %s118
      %s138 = sphi 0, %s140
      %s141 = sphi 0, %s138
      %s142 = sphi 0, %s141
      %s158 = sphi 0, %s142
    $region4: #{tpu_custom_call.1} parent=1 // loop_header_branch
      %21 = sbr.rel (%p19) target = $region8
    $region5: #{tpu_custom_call.1} parent=1 // loop_body
      %s23 = ssub.s32 %s18, 1
      %s24 = ssub.s32 %s18, 2
      %s25 = sadd.s32 %s18, 1
      %s27 = sadd.s32 %s26, 1
      %p30 = scmp.eq.s32.totalorder %s18, 3
      %p31 = scmp.ne.s32.totalorder %s26, %s28
      %p32 = scmp.eq.s32.totalorder %s18, 0
      %p33 = por %p31, %p32
      %p34 = scmp.ne.s32.totalorder %s26, %s28
      %p35 = scmp.eq.s32.totalorder %s23, 3
      %p36 = por %p34, %p35
      %p37 = scmp.ne.s32.totalorder %s28, %s29
      %p38 = scmp.eq.s32.totalorder %s23, 0
      %p39 = por %p37, %p38
      %p40 = scmp.ne.s32.totalorder %s28, %s29
      %p41 = scmp.eq.s32.totalorder %s24, 3
      %p42 = por %p40, %p41
      %p44 = scmp.ne.s32.totalorder %s29, %s43
      %p45 = scmp.eq.s32.totalorder %s24, 0
      %p46 = por %p44, %p45
      %s47 = ssub.s32 %s18, %s25
      %p48 = scmp.eq.s32.totalorder %s47, 0
      %s50 = sadd.s32 %s49, 1
      %s51 = scalar_select %p48, %s49, %s50
      %p54 = pneg %p48
      %p55 = scmp.eq.s32.totalorder %s18, 3
      %p56 = por %p54, %p55
      %p57 = scmp.ne.s32.totalorder %s49, %s52
      %p58 = scmp.eq.s32.totalorder %s18, 0
      %p59 = por %p57, %p58
      %p60 = scmp.ne.s32.totalorder %s49, %s52
      %p61 = scmp.eq.s32.totalorder %s23, 3
      %p62 = por %p60, %p61
      %p63 = scmp.ne.s32.totalorder %s52, %s53
      %p64 = scmp.eq.s32.totalorder %s23, 0
      %p65 = por %p63, %p64
      %p66 = scmp.ne.s32.totalorder %s52, %s53
      %p67 = scmp.eq.s32.totalorder %s24, 3
      %p68 = por %p66, %p67
      %p70 = scmp.ne.s32.totalorder %s53, %s69
      %p71 = scmp.eq.s32.totalorder %s24, 0
      %p72 = por %p70, %p71
      %s74 = sadd.s32 %s73, 1
      %p77 = scmp.eq.s32.totalorder %s18, 3
      %p78 = scmp.ne.s32.totalorder %s73, %s75
      %p79 = scmp.eq.s32.totalorder %s18, 0
      %p80 = por %p78, %p79
      %p81 = scmp.ne.s32.totalorder %s73, %s75
      %p82 = scmp.eq.s32.totalorder %s23, 3
      %p83 = por %p81, %p82
      %p84 = scmp.ne.s32.totalorder %s75, %s76
      %p85 = scmp.eq.s32.totalorder %s23, 0
      %p86 = por %p84, %p85
      %p87 = scmp.ne.s32.totalorder %s75, %s76
      %p88 = scmp.eq.s32.totalorder %s24, 3
      %p89 = por %p87, %p88
      %p91 = scmp.ne.s32.totalorder %s76, %s90
      %p92 = scmp.eq.s32.totalorder %s24, 0
      %p93 = por %p91, %p92
      %s95 = sadd.s32 %s94, 1
      %p98 = scmp.eq.s32.totalorder %s18, 3
      %p99 = scmp.ne.s32.totalorder %s94, %s96
      %p100 = scmp.eq.s32.totalorder %s18, 0
      %p101 = por %p99, %p100
      %p102 = scmp.ne.s32.totalorder %s94, %s96
      %p103 = scmp.eq.s32.totalorder %s23, 3
      %p104 = por %p102, %p103
      %p105 = scmp.ne.s32.totalorder %s96, %s97
      %p106 = scmp.eq.s32.totalorder %s23, 0
      %p107 = por %p105, %p106
      %p108 = scmp.ne.s32.totalorder %s96, %s97
      %p109 = scmp.eq.s32.totalorder %s24, 3
      %p110 = por %p108, %p109
      %p112 = scmp.ne.s32.totalorder %s97, %s111
      %p113 = scmp.eq.s32.totalorder %s24, 0
      %p114 = por %p112, %p113
      %s116 = sadd.s32 %s115, 1
      %p119 = scmp.eq.s32.totalorder %s18, 3
      %p120 = scmp.ne.s32.totalorder %s115, %s117
      %p121 = scmp.eq.s32.totalorder %s18, 0
      %p122 = por %p120, %p121
      %p123 = scmp.ne.s32.totalorder %s115, %s117
      %p124 = scmp.eq.s32.totalorder %s23, 3
      %p125 = por %p123, %p124
      %p126 = scmp.ne.s32.totalorder %s117, %s118
      %p127 = scmp.eq.s32.totalorder %s23, 0
      %p128 = por %p126, %p127
      %p129 = scmp.ne.s32.totalorder %s117, %s118
      %p130 = scmp.eq.s32.totalorder %s24, 3
      %p131 = por %p129, %p130
      %p133 = scmp.ne.s32.totalorder %s118, %s132
      %p134 = scmp.eq.s32.totalorder %s24, 0
      %p135 = por %p133, %p134
      %s136 = ssub.s32 %s18, %s25
      %p137 = scmp.eq.s32.totalorder %s136, 0
      %s139 = sadd.s32 %s138, 1
      %s140 = scalar_select %p137, %s138, %s139
      %p143 = pneg %p137
      %p144 = scmp.eq.s32.totalorder %s18, 3
      %p145 = por %p143, %p144
      %p146 = scmp.ne.s32.totalorder %s138, %s141
      %p147 = scmp.eq.s32.totalorder %s18, 0
      %p148 = por %p146, %p147
      %p149 = scmp.ne.s32.totalorder %s138, %s141
      %p150 = scmp.eq.s32.totalorder %s23, 3
      %p151 = por %p149, %p150
      %p152 = scmp.ne.s32.totalorder %s141, %s142
      %p153 = scmp.eq.s32.totalorder %s23, 0
      %p154 = por %p152, %p153
      %p155 = scmp.ne.s32.totalorder %s141, %s142
      %p156 = scmp.eq.s32.totalorder %s24, 3
      %p157 = por %p155, %p156
      %p159 = scmp.ne.s32.totalorder %s142, %s158
      %p160 = scmp.eq.s32.totalorder %s24, 0
      %p161 = por %p159, %p160
      %p162 = scmp.le.s32.totalorder 1, %s18
      %p163 = scmp.lt.s32.totalorder %s18, 5
      %p164 = pnand %p162, %p163
      %p165 = pneg %p164
      // Predicated region
      $region9: #{tpu_custom_call.1} parent=5 // pred_check
        _
      $region10: #{tpu_custom_call.1} parent=5 // pred_check_branch
        %167 = sbr.rel (%p164) target = $region12
      $region11: #{tpu_custom_call.1} parent=5 // pred_region
        %s168 = ssub.s32 %s18, 1
        // Predicated region
        $region13: #{tpu_custom_call.1} parent=11 // pred_check
          %p169 = pneg %p39
        $region14: #{tpu_custom_call.1} parent=11 // pred_check_branch
          %171 = sbr.rel (%p169) target = $region16
        $region15: #{tpu_custom_call.1} parent=11 // pred_region
          %173 = vsyncadd [#allocation5], 0
          %s175 = sshll.u32 %s0, 4
          %s176 = int_to_ptr.vmem [resolvable:$true] %s175
          %178 = dma.vmem_to_smem %s176, 16, [#allocation2], [#allocation5]
        $region16: #{tpu_custom_call.1} parent=11 // pred_fallthru
          _
        // Predicated region
        $region17: #{tpu_custom_call.1} parent=11 // pred_check
          %p179 = pneg %p86
        $region18: #{tpu_custom_call.1} parent=11 // pred_check_branch
          %181 = sbr.rel (%p179) target = $region20
        $region19: #{tpu_custom_call.1} parent=11 // pred_region
          _
        $region20: #{tpu_custom_call.1} parent=11 // pred_fallthru
          _
        // Predicated region
        $region21: #{tpu_custom_call.1} parent=11 // pred_check
          %p182 = pneg %p107
        $region22: #{tpu_custom_call.1} parent=11 // pred_check_branch
          %184 = sbr.rel (%p182) target = $region24
        $region23: #{tpu_custom_call.1} parent=11 // pred_region
          _
        $region24: #{tpu_custom_call.1} parent=11 // pred_fallthru
          _
        // Predicated region
        $region25: #{tpu_custom_call.1} parent=11 // pred_check
          %p185 = pneg %p128
        $region26: #{tpu_custom_call.1} parent=11 // pred_check_branch
          %187 = sbr.rel (%p185) target = $region28
        $region27: #{tpu_custom_call.1} parent=11 // pred_region
          _
        $region28: #{tpu_custom_call.1} parent=11 // pred_fallthru
          _
      $region12: #{tpu_custom_call.1} parent=5 // pred_fallthru
        _
      %p188 = scmp.lt.s32.totalorder %s18, 4
      // Predicated region
      $region29: #{tpu_custom_call.1} parent=5 // pred_check
        %p189 = pneg %p188
      $region30: #{tpu_custom_call.1} parent=5 // pred_check_branch
        %191 = sbr.rel (%p189) target = $region32
      $region31: #{tpu_custom_call.1} parent=5 // pred_region
        // Predicated region
        $region33: #{tpu_custom_call.1} parent=31 // pred_check
          %p192 = pneg %p59
        $region34: #{tpu_custom_call.1} parent=31 // pred_check_branch
          %194 = sbr.rel (%p192) target = $region36
        $region35: #{tpu_custom_call.1} parent=31 // pred_region
          %s195 = sand.u32 %s49, 1
          %s196 = scalar_lea.sflag [#allocation3], %s195
          %s197 = sand.u32 %s49, 1
          %s198 = smul.addr %s197, 64
          %s199 = scalar_lea.vmem [#allocation6], %s198
          %s200 = smul.u32 8, %s18
          %202 = vsyncadd %s196, 0
          %s203 = smul.addr %s200, 8
          %s204 = scalar_lea.hbm %s1, %s203
          %s206 = sshll.u32 %s204, 4
          %s207 = int_to_ptr.hbm [resolvable:$true] %s206
          %s208 = sshll.u32 %s199, 4
          %s209 = int_to_ptr.vmem [resolvable:$true] %s208
          %211 = dma.hbm_to_vmem [thread:$0]  %s207, 1024, %s209, %s196
        $region36: #{tpu_custom_call.1} parent=31 // pred_fallthru
          _
      $region32: #{tpu_custom_call.1} parent=5 // pred_fallthru
        _
      %p212 = scmp.le.s32.totalorder 1, %s18
      %p213 = scmp.lt.s32.totalorder %s18, 5
      %p214 = pnand %p212, %p213
      %p215 = pneg %p214
      // Predicated region
      $region37: #{tpu_custom_call.1} parent=5 // pred_check
        _
      $region38: #{tpu_custom_call.1} parent=5 // pred_check_branch
        %217 = sbr.rel (%p214) target = $region40
      $region39: #{tpu_custom_call.1} parent=5 // pred_region
        %s218 = ssub.s32 %s18, 1
        // Predicated region
        $region41: #{tpu_custom_call.1} parent=39 // pred_check
          %p219 = pneg %p39
        $region42: #{tpu_custom_call.1} parent=39 // pred_check_branch
          %221 = sbr.rel (%p219) target = $region44
        $region43: #{tpu_custom_call.1} parent=39 // pred_region
          %223 = dma.done [#allocation5], 16
        $region44: #{tpu_custom_call.1} parent=39 // pred_fallthru
          _
        %s224 = sand.u32 %s52, 1
        %s225 = scalar_lea.sflag [#allocation3], %s224
        %s226 = sand.u32 %s52, 1
        %s227 = smul.addr %s226, 64
        %s228 = scalar_lea.vmem [#allocation6], %s227
        // Predicated region
        $region45: #{tpu_custom_call.1} parent=39 // pred_check
          %p229 = pneg %p65
        $region46: #{tpu_custom_call.1} parent=39 // pred_check_branch
          %231 = sbr.rel (%p229) target = $region48
        $region47: #{tpu_custom_call.1} parent=39 // pred_region
          %233 = dma.done %s225, 1024
        $region48: #{tpu_custom_call.1} parent=39 // pred_fallthru
          _
        %234 = sfence
        %p235 = pneg %p39
        %p236 = pneg %p36
        %s237 = sand.u32 %s52, 1
        %s238 = scalar_lea.sflag [#allocation3], %s237
        %s239 = sand.u32 %s52, 1
        %s240 = smul.addr %s239, 64
        %s241 = scalar_lea.vmem [#allocation6], %s240
        %p242 = pneg %p65
        %p243 = pneg %p62
        %p244 = pneg %p86
        %p245 = pneg %p83
        %p246 = pneg %p107
        %p247 = pneg %p104
        %p248 = pneg %p128
        %p249 = pneg %p125
        %p250 = pneg %p154
        %p251 = pneg %p151
        %s252 = sand.u32 %s141, 1
        %s253 = scalar_lea.sflag [#allocation4], %s252
        %s254 = sand.u32 %s141, 1
        %s255 = smul.addr %s254, 16
        %s256 = scalar_lea.vmem [#allocation7], %s255
        %s257 = smul.u32 8, %s23
        %s258 = smul.u32 8, %s23
        %v259 = vld [vmem:[%s228] sm:$0x7f]
        %v260 = vld [vmem:[%s228 + $0x8] sm:$0x7f]
        %v261 = vld [vmem:[%s228 + $0x10] sm:$0x7f]
        %v262 = vld [vmem:[%s228 + $0x18] sm:$0x7f]
        %v263 = vld [vmem:[%s228 + $0x20] sm:$0x7f]
        %v264 = vld [vmem:[%s228 + $0x28] sm:$0x7f]
        %v265 = vld [vmem:[%s228 + $0x30] sm:$0x7f]
        %v266 = vld [vmem:[%s228 + $0x38] sm:$0x7f]
        %v267 = vld [vmem:[%s2] sm:$0x7f]
        %v268 = vld [vmem:[%s4] sm:$0x7f]
        %270 = vset.pattern.permute.xlu0 0
        %271 = vperm.xlu0 %270, %v268
        %v272 = vpop.permute.xlu0 %271
        %v274 = vmul.f32 %v272, %v259
        %v275 = vmul.f32 %v272, %v260
        %v276 = vmul.f32 %v272, %v261
        %v277 = vmul.f32 %v272, %v262
        %v278 = vmul.f32 %v272, %v263
        %v279 = vmul.f32 %v272, %v264
        %v280 = vmul.f32 %v272, %v265
        %v281 = vmul.f32 %v272, %v266
        %vm282 = vcmask 1046528
        %v283 = vsel %vm282, %v274, 0.0
        %v284 = vrot.slane %v283, 4
        %v285 = vadd.f32 %v283, %v284
        %v286 = vrot.slane %v285, 2
        %v287 = vadd.f32 %v285, %v286
        %v288 = vrot.slane %v287, 1
        %v289 = vadd.f32 %v287, %v288
        %v290 = vsel %vm282, %v275, 0.0
        %v291 = vrot.slane %v290, 4
        %v292 = vadd.f32 %v290, %v291
        %v293 = vrot.slane %v292, 2
        %v294 = vadd.f32 %v292, %v293
        %v295 = vrot.slane %v294, 1
        %v296 = vadd.f32 %v294, %v295
        %v297 = vsel %vm282, %v276, 0.0
        %v298 = vrot.slane %v297, 4
        %v299 = vadd.f32 %v297, %v298
        %v300 = vrot.slane %v299, 2
        %v301 = vadd.f32 %v299, %v300
        %v302 = vrot.slane %v301, 1
        %v303 = vadd.f32 %v301, %v302
        %v304 = vsel %vm282, %v277, 0.0
        %v305 = vrot.slane %v304, 4
        %v306 = vadd.f32 %v304, %v305
        %v307 = vrot.slane %v306, 2
        %v308 = vadd.f32 %v306, %v307
        %v309 = vrot.slane %v308, 1
        %v310 = vadd.f32 %v308, %v309
        %v311 = vsel %vm282, %v278, 0.0
        %v312 = vrot.slane %v311, 4
        %v313 = vadd.f32 %v311, %v312
        %v314 = vrot.slane %v313, 2
        %v315 = vadd.f32 %v313, %v314
        %v316 = vrot.slane %v315, 1
        %v317 = vadd.f32 %v315, %v316
        %v318 = vsel %vm282, %v279, 0.0
        %v319 = vrot.slane %v318, 4
        %v320 = vadd.f32 %v318, %v319
        %v321 = vrot.slane %v320, 2
        %v322 = vadd.f32 %v320, %v321
        %v323 = vrot.slane %v322, 1
        %v324 = vadd.f32 %v322, %v323
        %v325 = vsel %vm282, %v280, 0.0
        %v326 = vrot.slane %v325, 4
        %v327 = vadd.f32 %v325, %v326
        %v328 = vrot.slane %v327, 2
        %v329 = vadd.f32 %v327, %v328
        %v330 = vrot.slane %v329, 1
        %v331 = vadd.f32 %v329, %v330
        %v332 = vsel %vm282, %v281, 0.0
        %v333 = vrot.slane %v332, 4
        %v334 = vadd.f32 %v332, %v333
        %v335 = vrot.slane %v334, 2
        %v336 = vadd.f32 %v334, %v335
        %v337 = vrot.slane %v336, 1
        %v338 = vadd.f32 %v336, %v337
        %s339 = sld [smem:[#allocation2]]
        %v340 = vstv %s339
        %v341 = vadd.f32 %v289, %v340
        %v342 = vadd.f32 %v296, %v340
        %v343 = vadd.f32 %v303, %v340
        %v344 = vadd.f32 %v310, %v340
        %v345 = vadd.f32 %v317, %v340
        %v346 = vadd.f32 %v324, %v340
        %v347 = vadd.f32 %v331, %v340
        %v348 = vadd.f32 %v338, %v340
        %v349 = vld [vmem:[%s3] sm:$0x7f]
        %351 = vset.pattern.permute.xlu0 0
        %352 = vperm.xlu0 %351, %v349
        %v353 = vpop.permute.xlu0 %352
        %vm355 = vcmask 56320
        %v357 = vsel %vm355, %v267, 0
        %v360 = vsel %vm282, %v259, 0
        %v363 = vsel %vm282, %v260, 0
        %v366 = vsel %vm282, %v261, 0
        %v369 = vsel %vm282, %v262, 0
        %v372 = vsel %vm282, %v263, 0
        %v375 = vsel %vm282, %v264, 0
        %v378 = vsel %vm282, %v265, 0
        %v381 = vsel %vm282, %v266, 0
        %383 = vmatpush.msra.mxu0 0.0
        %384 = vmatpush.msra.mxu0 0.0
        %385 = vmatpush.msra.mxu0 0.0
        %386 = vmatpush.msra.mxu0 0.0
        %387 = vmatpush.msra.mxu0 0.0
        %388 = vmatpush.msra.mxu0 0.0
        %389 = vmatpush.msra.mxu0 0.0
        %390 = vmatpush.msra.mxu0 0.0
        %391 = vmatpush.msra.mxu0 0.0
        %392 = vmatpush.msra.mxu0 0.0
        %393 = vmatpush.msra.mxu0 0.0
        %394 = vmatpush.msra.mxu0 0.0
        %395 = vmatpush.msra.mxu0 0.0
        %396 = vmatpush.msra.mxu0 0.0
        %397 = vmatpush.msra.mxu0 0.0
        %398 = vmatpush.msra.mxu0 %v360
        %399 = vmatmul.f32.gmra.mxu0 %v357
        %v400 = vpop.f32.mrf.mxu0
        %v401 = vadd.f32 %v353, %v400
        %402 = vdwg.mxu0
        %403 = vmatpush.msra.mxu0 0.0
        %404 = vmatpush.msra.mxu0 0.0
        %405 = vmatpush.msra.mxu0 0.0
        %406 = vmatpush.msra.mxu0 0.0
        %407 = vmatpush.msra.mxu0 0.0
        %408 = vmatpush.msra.mxu0 0.0
        %409 = vmatpush.msra.mxu0 0.0
        %410 = vmatpush.msra.mxu0 0.0
        %411 = vmatpush.msra.mxu0 0.0
        %412 = vmatpush.msra.mxu0 0.0
        %413 = vmatpush.msra.mxu0 0.0
        %414 = vmatpush.msra.mxu0 0.0
        %415 = vmatpush.msra.mxu0 0.0
        %416 = vmatpush.msra.mxu0 0.0
        %417 = vmatpush.msra.mxu0 0.0
        %418 = vmatpush.msra.mxu0 %v363
        %419 = vmatmul.f32.gmra.mxu0 %v357
        %v420 = vpop.f32.mrf.mxu0
        %v421 = vadd.f32 %v353, %v420
        %422 = vdwg.mxu0
        %423 = vmatpush.msra.mxu0 0.0
        %424 = vmatpush.msra.mxu0 0.0
        %425 = vmatpush.msra.mxu0 0.0
        %426 = vmatpush.msra.mxu0 0.0
        %427 = vmatpush.msra.mxu0 0.0
        %428 = vmatpush.msra.mxu0 0.0
        %429 = vmatpush.msra.mxu0 0.0
        %430 = vmatpush.msra.mxu0 0.0
        %431 = vmatpush.msra.mxu0 0.0
        %432 = vmatpush.msra.mxu0 0.0
        %433 = vmatpush.msra.mxu0 0.0
        %434 = vmatpush.msra.mxu0 0.0
        %435 = vmatpush.msra.mxu0 0.0
        %436 = vmatpush.msra.mxu0 0.0
        %437 = vmatpush.msra.mxu0 0.0
        %438 = vmatpush.msra.mxu0 %v366
        %439 = vmatmul.f32.gmra.mxu0 %v357
        %v440 = vpop.f32.mrf.mxu0
        %v441 = vadd.f32 %v353, %v440
        %442 = vdwg.mxu0
        %443 = vmatpush.msra.mxu0 0.0
        %444 = vmatpush.msra.mxu0 0.0
        %445 = vmatpush.msra.mxu0 0.0
        %446 = vmatpush.msra.mxu0 0.0
        %447 = vmatpush.msra.mxu0 0.0
        %448 = vmatpush.msra.mxu0 0.0
        %449 = vmatpush.msra.mxu0 0.0
        %450 = vmatpush.msra.mxu0 0.0
        %451 = vmatpush.msra.mxu0 0.0
        %452 = vmatpush.msra.mxu0 0.0
        %453 = vmatpush.msra.mxu0 0.0
        %454 = vmatpush.msra.mxu0 0.0
        %455 = vmatpush.msra.mxu0 0.0
        %456 = vmatpush.msra.mxu0 0.0
        %457 = vmatpush.msra.mxu0 0.0
        %458 = vmatpush.msra.mxu0 %v369
        %459 = vmatmul.f32.gmra.mxu0 %v357
        %v460 = vpop.f32.mrf.mxu0
        %v461 = vadd.f32 %v353, %v460
        %462 = vdwg.mxu0
        %463 = vmatpush.msra.mxu0 0.0
        %464 = vmatpush.msra.mxu0 0.0
        %465 = vmatpush.msra.mxu0 0.0
        %466 = vmatpush.msra.mxu0 0.0
        %467 = vmatpush.msra.mxu0 0.0
        %468 = vmatpush.msra.mxu0 0.0
        %469 = vmatpush.msra.mxu0 0.0
        %470 = vmatpush.msra.mxu0 0.0
        %471 = vmatpush.msra.mxu0 0.0
        %472 = vmatpush.msra.mxu0 0.0
        %473 = vmatpush.msra.mxu0 0.0
        %474 = vmatpush.msra.mxu0 0.0
        %475 = vmatpush.msra.mxu0 0.0
        %476 = vmatpush.msra.mxu0 0.0
        %477 = vmatpush.msra.mxu0 0.0
        %478 = vmatpush.msra.mxu0 %v372
        %479 = vmatmul.f32.gmra.mxu0 %v357
        %v480 = vpop.f32.mrf.mxu0
        %v481 = vadd.f32 %v353, %v480
        %482 = vdwg.mxu0
        %483 = vmatpush.msra.mxu0 0.0
        %484 = vmatpush.msra.mxu0 0.0
        %485 = vmatpush.msra.mxu0 0.0
        %486 = vmatpush.msra.mxu0 0.0
        %487 = vmatpush.msra.mxu0 0.0
        %488 = vmatpush.msra.mxu0 0.0
        %489 = vmatpush.msra.mxu0 0.0
        %490 = vmatpush.msra.mxu0 0.0
        %491 = vmatpush.msra.mxu0 0.0
        %492 = vmatpush.msra.mxu0 0.0
        %493 = vmatpush.msra.mxu0 0.0
        %494 = vmatpush.msra.mxu0 0.0
        %495 = vmatpush.msra.mxu0 0.0
        %496 = vmatpush.msra.mxu0 0.0
        %497 = vmatpush.msra.mxu0 0.0
        %498 = vmatpush.msra.mxu0 %v375
        %499 = vmatmul.f32.gmra.mxu0 %v357
        %v500 = vpop.f32.mrf.mxu0
        %v501 = vadd.f32 %v353, %v500
        %502 = vdwg.mxu0
        %503 = vmatpush.msra.mxu0 0.0
        %504 = vmatpush.msra.mxu0 0.0
        %505 = vmatpush.msra.mxu0 0.0
        %506 = vmatpush.msra.mxu0 0.0
        %507 = vmatpush.msra.mxu0 0.0
        %508 = vmatpush.msra.mxu0 0.0
        %509 = vmatpush.msra.mxu0 0.0
        %510 = vmatpush.msra.mxu0 0.0
        %511 = vmatpush.msra.mxu0 0.0
        %512 = vmatpush.msra.mxu0 0.0
        %513 = vmatpush.msra.mxu0 0.0
        %514 = vmatpush.msra.mxu0 0.0
        %515 = vmatpush.msra.mxu0 0.0
        %516 = vmatpush.msra.mxu0 0.0
        %517 = vmatpush.msra.mxu0 0.0
        %518 = vmatpush.msra.mxu0 %v378
        %519 = vmatmul.f32.gmra.mxu0 %v357
        %v520 = vpop.f32.mrf.mxu0
        %v521 = vadd.f32 %v353, %v520
        %522 = vdwg.mxu0
        %523 = vmatpush.msra.mxu0 0.0
        %524 = vmatpush.msra.mxu0 0.0
        %525 = vmatpush.msra.mxu0 0.0
        %526 = vmatpush.msra.mxu0 0.0
        %527 = vmatpush.msra.mxu0 0.0
        %528 = vmatpush.msra.mxu0 0.0
        %529 = vmatpush.msra.mxu0 0.0
        %530 = vmatpush.msra.mxu0 0.0
        %531 = vmatpush.msra.mxu0 0.0
        %532 = vmatpush.msra.mxu0 0.0
        %533 = vmatpush.msra.mxu0 0.0
        %534 = vmatpush.msra.mxu0 0.0
        %535 = vmatpush.msra.mxu0 0.0
        %536 = vmatpush.msra.mxu0 0.0
        %537 = vmatpush.msra.mxu0 0.0
        %538 = vmatpush.msra.mxu0 %v381
        %539 = vmatmul.f32.gmra.mxu0 %v357
        %v540 = vpop.f32.mrf.mxu0
        %v541 = vadd.f32 %v353, %v540
        %542 = vdwg.mxu0
        %v543 = vmul.f32 %v401, %v259
        %v544 = vmul.f32 %v421, %v260
        %v545 = vmul.f32 %v441, %v261
        %v546 = vmul.f32 %v461, %v262
        %v547 = vmul.f32 %v481, %v263
        %v548 = vmul.f32 %v501, %v264
        %v549 = vmul.f32 %v521, %v265
        %v550 = vmul.f32 %v541, %v266
        %v551 = vsel %vm282, %v543, 0.0
        %v552 = vrot.slane %v551, 4
        %v553 = vadd.f32 %v551, %v552
        %v554 = vrot.slane %v553, 2
        %v555 = vadd.f32 %v553, %v554
        %v556 = vrot.slane %v555, 1
        %v557 = vadd.f32 %v555, %v556
        %v558 = vsel %vm282, %v544, 0.0
        %v559 = vrot.slane %v558, 4
        %v560 = vadd.f32 %v558, %v559
        %v561 = vrot.slane %v560, 2
        %v562 = vadd.f32 %v560, %v561
        %v563 = vrot.slane %v562, 1
        %v564 = vadd.f32 %v562, %v563
        %v565 = vsel %vm282, %v545, 0.0
        %v566 = vrot.slane %v565, 4
        %v567 = vadd.f32 %v565, %v566
        %v568 = vrot.slane %v567, 2
        %v569 = vadd.f32 %v567, %v568
        %v570 = vrot.slane %v569, 1
        %v571 = vadd.f32 %v569, %v570
        %v572 = vsel %vm282, %v546, 0.0
        %v573 = vrot.slane %v572, 4
        %v574 = vadd.f32 %v572, %v573
        %v575 = vrot.slane %v574, 2
        %v576 = vadd.f32 %v574, %v575
        %v577 = vrot.slane %v576, 1
        %v578 = vadd.f32 %v576, %v577
        %v579 = vsel %vm282, %v547, 0.0
        %v580 = vrot.slane %v579, 4
        %v581 = vadd.f32 %v579, %v580
        %v582 = vrot.slane %v581, 2
        %v583 = vadd.f32 %v581, %v582
        %v584 = vrot.slane %v583, 1
        %v585 = vadd.f32 %v583, %v584
        %v586 = vsel %vm282, %v548, 0.0
        %v587 = vrot.slane %v586, 4
        %v588 = vadd.f32 %v586, %v587
        %v589 = vrot.slane %v588, 2
        %v590 = vadd.f32 %v588, %v589
        %v591 = vrot.slane %v590, 1
        %v592 = vadd.f32 %v590, %v591
        %v593 = vsel %vm282, %v549, 0.0
        %v594 = vrot.slane %v593, 4
        %v595 = vadd.f32 %v593, %v594
        %v596 = vrot.slane %v595, 2
        %v597 = vadd.f32 %v595, %v596
        %v598 = vrot.slane %v597, 1
        %v599 = vadd.f32 %v597, %v598
        %v600 = vsel %vm282, %v550, 0.0
        %v601 = vrot.slane %v600, 4
        %v602 = vadd.f32 %v600, %v601
        %v603 = vrot.slane %v602, 2
        %v604 = vadd.f32 %v602, %v603
        %v605 = vrot.slane %v604, 1
        %v606 = vadd.f32 %v604, %v605
        %s607 = sld [smem:[#allocation2 + $0x1]]
        %v608 = vstv %s607
        %v609 = vadd.f32 %v557, %v608
        %v610 = vadd.f32 %v564, %v608
        %v611 = vadd.f32 %v571, %v608
        %v612 = vadd.f32 %v578, %v608
        %v613 = vadd.f32 %v585, %v608
        %v614 = vadd.f32 %v592, %v608
        %v615 = vadd.f32 %v599, %v608
        %v616 = vadd.f32 %v606, %v608
        %vm617 = vcmask 1040384
        %v618 = vsel %vm617, %v341, %v609
        %v619 = vsel %vm617, %v342, %v610
        %v620 = vsel %vm617, %v343, %v611
        %v621 = vsel %vm617, %v344, %v612
        %v622 = vsel %vm617, %v345, %v613
        %v623 = vsel %vm617, %v346, %v614
        %v624 = vsel %vm617, %v347, %v615
        %v625 = vsel %vm617, %v348, %v616
        %v634 = vrot.slane %v619, 6
        %v635 = vrot.slane %v620, 4
        %v636 = vrot.slane %v621, 2
        %v637 = vrot.slane %v623, 6
        %v638 = vrot.slane %v624, 4
        %v639 = vrot.slane %v625, 2
        %vm640 = vcmask 1041408
        %v641 = vsel %vm640, %v618, %v634
        %vm642 = vcmask 1045508
        %v643 = vsel %vm642, %v635, %v636
        %vm644 = vcmask 1043456
        %v645 = vsel %vm644, %v641, %v643
        %v646 = vsel %vm640, %v622, %v637
        %v647 = vsel %vm642, %v638, %v639
        %v648 = vsel %vm644, %v646, %v647
        %651 = vst [vmem:[%s256] sm:$0xff] %v645
        %652 = vst [vmem:[%s256 + $0x8] sm:$0xff] %v648
        %s653 = sand.u32 %s141, 1
        %s654 = scalar_lea.sflag [#allocation4], %s653
        %s655 = sand.u32 %s141, 1
        %s656 = smul.addr %s655, 16
        %s657 = scalar_lea.vmem [#allocation7], %s656
        // Predicated region
        $region49: #{tpu_custom_call.1} parent=39 // pred_check
          %p658 = pneg %p151
        $region50: #{tpu_custom_call.1} parent=39 // pred_check_branch
          %660 = sbr.rel (%p658) target = $region52
        $region51: #{tpu_custom_call.1} parent=39 // pred_region
          %s661 = smul.u32 8, %s23
          %663 = vsyncadd %s654, 0
          %s664 = smul.addr %s661, 2
          %s665 = scalar_lea.hbm %s5, %s664
          %s667 = sshll.u32 %s657, 4
          %s668 = int_to_ptr.vmem [resolvable:$true] %s667
          %s669 = sshll.u32 %s665, 4
          %s670 = int_to_ptr.hbm [resolvable:$true] %s669
          %672 = dma.vmem_to_hbm [thread:$0]  %s668, 256, %s670, %s654
        $region52: #{tpu_custom_call.1} parent=39 // pred_fallthru
          _
      $region40: #{tpu_custom_call.1} parent=5 // pred_fallthru
        _
      %p673 = scmp.le.s32.totalorder 2, %s18
      // Predicated region
      $region53: #{tpu_custom_call.1} parent=5 // pred_check
        %p674 = pneg %p673
      $region54: #{tpu_custom_call.1} parent=5 // pred_check_branch
        %676 = sbr.rel (%p674) target = $region56
      $region55: #{tpu_custom_call.1} parent=5 // pred_region
        %s677 = ssub.s32 %s18, 2
        // Predicated region
        $region57: #{tpu_custom_call.1} parent=55 // pred_check
          %p678 = pneg %p157
        $region58: #{tpu_custom_call.1} parent=55 // pred_check_branch
          %680 = sbr.rel (%p678) target = $region60
        $region59: #{tpu_custom_call.1} parent=55 // pred_region
          %s681 = sand.u32 %s142, 1
          %s682 = scalar_lea.sflag [#allocation4], %s681
          %s683 = sand.u32 %s142, 1
          %s684 = smul.addr %s683, 16
          %s685 = scalar_lea.vmem [#allocation7], %s684
          %687 = dma.done %s682, 256
        $region60: #{tpu_custom_call.1} parent=55 // pred_fallthru
          _
      $region56: #{tpu_custom_call.1} parent=5 // pred_fallthru
        _
    $region6: #{tpu_custom_call.1} parent=1 // loop_footer
      %s22 = sadd.s32 1, %s18
    $region7: #{tpu_custom_call.1} parent=1 // loop_footer_branch
      %17 = sbr.rel target = $region3
    $region8: #{tpu_custom_call.1} parent=1 // loop_exit
      _
    %688 = vsyncpa [#allocation3], 1
    %s689 = scalar_lea.sflag [#allocation3], 1
    %690 = vsyncpa %s689, 1
    %691 = vsyncpa [#allocation4], 1
    %s692 = scalar_lea.sflag [#allocation4], 1
    %693 = vsyncpa %s692, 1
    %694 = vsyncpa [#allocation5], 1
    %s695 = scalar_lea.sflag [#allocation5], 1
    %696 = vsyncpa %s695, 1

</llo_original>
